<compile_context>
chip_gen: v7x
topology: tpu7x:2x2x1
jax: 0.10.0
libtpu: 0.0.40
codegen_flags: <defaults>
</compile_context>

<pallas_src>
import functools

import jax
import jax.numpy as jnp
import numpy as np
from jax import lax
from jax.experimental import pallas as pl
from jax.experimental.pallas import tpu as pltpu


_LANES = 128
_TR_MAX = 1024  # 128-lane rows per grid step: 1 MiB logits + 0.5 MiB labels / block


def _ohem_ce_kernel(x_ref, y_ref, negmap_ref, part_ref, *, tr, hw128):
    # x_ref: (1, 2, tr, 128) logits; y_ref: (1, tr, 128) labels
    t = pl.program_id(1)

    x0 = x_ref[0, 0].astype(jnp.float32)   # class-0 logits, (tr, 128)
    x1 = x_ref[0, 1].astype(jnp.float32)   # class-1 logits, (tr, 128)
    y = y_ref[0]                           # labels, (tr, 128) int

    # Mask rows past the true pixel extent (the last grid block may overrun).
    row = lax.broadcasted_iota(jnp.int32, (tr, _LANES), 0)
    valid = (t * tr + row) < hw128

    # 2-class CE via the shared softplus term:
    #   lse - x1 = relu(x0 - x1) + log1p(exp(-|x0 - x1|))
    #   lse - x0 = relu(x1 - x0) + log1p(exp(-|x0 - x1|))
    d = x0 - x1
    sp = jnp.log1p(jnp.exp(-jnp.abs(d)))
    pos_loss = jnp.maximum(d, 0.0) + sp    # CE(logits, target=1)
    neg_loss = jnp.maximum(-d, 0.0) + sp   # CE(logits, target=0)

    pos_mask = (y == 1) & valid
    neg_mask = (y == 0) & valid            # ignore_index / tail pixels drop out

    # Negated negative losses with +inf sentinel: ascending sort puts the
    # top-k largest losses first, so no reverse / isfinite pass downstream.
    negmap_ref[0] = jnp.where(neg_mask, -neg_loss, jnp.inf)

    # Per-block, per-lane partial reductions (rows 0..2 of an (8,128) tile);
    # exact final reduction happens in JAX, so no output block is revisited.
    part_ref[0, 0] = jnp.zeros((8, _LANES), jnp.float32)
    part_ref[0, 0, 0:1, :] = jnp.sum(
        jnp.where(pos_mask, pos_loss, 0.0), axis=0, keepdims=True)
    part_ref[0, 0, 1:2, :] = jnp.sum(
        pos_mask.astype(jnp.float32), axis=0, keepdims=True)
    part_ref[0, 0, 2:3, :] = jnp.sum(
        neg_mask.astype(jnp.float32), axis=0, keepdims=True)


def ce_ohem_loss(output, target, ratio=3, ignore_index=255):
    """JAX/Pallas equivalent of CEOhem.forward (weight=None)."""
    N, C, H, W = output.shape
    assert C == 2, "CEOhem slices exactly channels 0 and 1"
    HW = H * W

    x = output.reshape(N, C, HW)
    y = target.reshape(N, HW)
    if HW % _LANES != 0:
        # One-time pad only for odd spatial sizes; padded pixels carry the
        # ignore label so they drop out of every reduction.
        pad = _LANES - HW % _LANES
        x = jnp.pad(x, ((0, 0), (0, 0), (0, pad)))
        y = jnp.pad(y, ((0, 0), (0, pad)), constant_values=ignore_index)
        HW += pad
    hw128 = HW // _LANES

    x = x.reshape(N, C, hw128, _LANES)   # metadata-only reshape
    y = y.reshape(N, hw128, _LANES)

    tr = hw128 if hw128 <= _TR_MAX else _TR_MAX
    nt = pl.cdiv(hw128, tr)

    kernel = functools.partial(_ohem_ce_kernel, tr=tr, hw128=hw128)

    negmap, partials = pl.pallas_call(
        kernel,
        grid=(N, nt),
        in_specs=[
            pl.BlockSpec((1, C, tr, _LANES), lambda n, t: (n, 0, t, 0)),
            pl.BlockSpec((1, tr, _LANES), lambda n, t: (n, t, 0)),
        ],
        out_specs=(
            pl.BlockSpec((1, tr, _LANES), lambda n, t: (n, t, 0)),
            pl.BlockSpec((1, 1, 8, _LANES), lambda n, t: (n, t, 0, 0)),
        ),
        out_shape=(
            jax.ShapeDtypeStruct((N, nt * tr, _LANES), jnp.float32),  # -neg losses / +inf
            jax.ShapeDtypeStruct((N, nt, 8, _LANES), jnp.float32),    # partial reductions
        ),
        compiler_params=pltpu.CompilerParams(
            dimension_semantics=("parallel", "parallel")),
    )(x, y)

    # Exact finalization of the tiny partial tiles.
    pos_sum = jnp.sum(partials[:, :, 0, :])
    n_pos = jnp.sum(partials[:, :, 1, :].astype(jnp.int32))
    n_neg = jnp.sum(partials[:, :, 2, :].astype(jnp.int32))

    # torch: k = min(x_pos_final.numel() * ratio, neg_losses.numel()); numel = 2 * n_pos
    k = jnp.minimum(2 * n_pos * ratio, n_neg)
    k_safe = jnp.maximum(k, 1)

    # TODO(synk): the O(M log M) sort could be replaced by a two-pass in-kernel
    # histogram-threshold OHEM selection; kept as a JAX sort for now.
    neg_sorted = jnp.sort(negmap.reshape(-1))          # ascending; sentinels (+inf) last
    idx = jnp.arange(neg_sorted.shape[0], dtype=jnp.int32)
    topk_sum = -jnp.sum(jnp.where(idx < k_safe, neg_sorted, 0.0))
    # Edge cases (documented divergence from torch): n_pos == 0 gives a top-1
    # negative mean instead of NaN; n_neg == 0 gives 0 instead of NaN.
    neg_topk_mean = jnp.where(n_neg > 0, topk_sum / k_safe.astype(jnp.float32), 0.0)

    pos_mean = pos_sum / jnp.maximum(n_pos, 1).astype(jnp.float32)

    # TODO(synk): the PyTorch forward also computes/prints `normal_loss` (full-map
    # CE .item()) purely as a print side effect; it never affects the returned
    # loss and is dropped here.
    return (neg_topk_mean + ratio * pos_mean) / 4.0


def _reference_loss_np(output, target, ratio=3):
    """Pure-NumPy replica of CEOhem.forward (weight=None) for verification."""
    x0 = output[:, 0, :, :].reshape(-1)
    x1 = output[:, 1, :, :].reshape(-1)
    y = target.reshape(-1)
    lse = np.logaddexp(x0, x1)
    pos = (lse - x1)[y == 1]          # CE of positive pixels vs class 1
    neg = (lse - x0)[y == 0]          # CE of negative pixels vs class 0
    k = min(pos.size * 2 * ratio, neg.size)
    topk = np.sort(neg)[::-1][:k]
    return (topk.mean() + ratio * pos.mean()) / 4.0


if __name__ == "__main__":
    key = jax.random.PRNGKey(0)
    k1, k2 = jax.random.split(key)

    N, C, H, W = 2, 2, 16, 16
    output = jax.random.normal(k1, (N, C, H, W), dtype=jnp.float32)
    # ~10% positives so the top-k truncation path is actually exercised.
    target = (jax.random.uniform(k2, (N, H, W)) < 0.1).astype(jnp.int32)
    # exercise ignore_index pixels
    target = target.at[0, 0, 0].set(255)
    target = target.at[1, 3, 5].set(255)

    loss = jax.jit(ce_ohem_loss)(output, target)
    loss = jax.block_until_ready(loss)

    ref = _reference_loss_np(np.asarray(output), np.asarray(target))
    assert np.allclose(float(loss), float(ref), rtol=1e-5, atol=1e-5), (float(loss), float(ref))
    print("KERNEL_OK")
</pallas_src>

<mosaic_0001>
module attributes {stable_mosaic.version = 11 : i64} {
  func.func @_ohem_ce_kernel(%arg0: i32, %arg1: i32, %arg2: memref<1x2x2x128xf32, #tpu.memory_space<vmem>>, %arg3: memref<1x2x128xi32, #tpu.memory_space<vmem>>, %arg4: memref<1x2x128xf32, #tpu.memory_space<vmem>>, %arg5: memref<1x1x8x128xf32, #tpu.memory_space<vmem>>) attributes {dimension_semantics = [#tpu.dimension_semantics<parallel>, #tpu.dimension_semantics<parallel>], iteration_bounds = array<i64: 2, 1>, scalar_prefetch = 0 : i64, scratch_operands = 0 : i64, tpu.core_type = #tpu.core_type<tc>, window_params = [{transform_indices = @transform_0, window_bounds = array<i64: 1, 2, 2, 128>}, {transform_indices = @transform_1, window_bounds = array<i64: 1, 2, 128>}, {transform_indices = @transform_2, window_bounds = array<i64: 1, 2, 128>}, {transform_indices = @transform_3, window_bounds = array<i64: 1, 1, 8, 128>}]} {
    %c0 = arith.constant 0 : index
    %c0_0 = arith.constant 0 : index
    %c0_1 = arith.constant 0 : index
    %c0_2 = arith.constant 0 : index
    %0 = vector.load %arg2[%c0, %c0_0, %c0_1, %c0_2] : memref<1x2x2x128xf32, #tpu.memory_space<vmem>>, vector<1x1x2x128xf32>
    %1 = vector.shape_cast %0 : vector<1x1x2x128xf32> to vector<2x128xf32>
    %c0_3 = arith.constant 0 : index
    %c1 = arith.constant 1 : index
    %c0_4 = arith.constant 0 : index
    %c0_5 = arith.constant 0 : index
    %2 = vector.load %arg2[%c0_3, %c1, %c0_4, %c0_5] : memref<1x2x2x128xf32, #tpu.memory_space<vmem>>, vector<1x1x2x128xf32>
    %3 = vector.shape_cast %2 : vector<1x1x2x128xf32> to vector<2x128xf32>
    %c0_6 = arith.constant 0 : index
    %c0_7 = arith.constant 0 : index
    %c0_8 = arith.constant 0 : index
    %4 = vector.load %arg3[%c0_6, %c0_7, %c0_8] : memref<1x2x128xi32, #tpu.memory_space<vmem>>, vector<1x2x128xi32>
    %5 = vector.shape_cast %4 : vector<1x2x128xi32> to vector<2x128xi32>
    %6 = tpu.iota {dimensions = array<i32: 0>} : vector<2x128xi32>
    %c2_i32 = arith.constant 2 : i32
    %7 = arith.muli %arg1, %c2_i32 : i32
    %8 = vector.broadcast %7 : i32 to vector<2x128xi32>
    %9 = arith.addi %8, %6 : vector<2x128xi32>
    %c2_i32_9 = arith.constant 2 : i32
    %10 = vector.broadcast %c2_i32_9 : i32 to vector<2x128xi32>
    %11 = arith.cmpi slt, %9, %10 : vector<2x128xi32>
    %12 = arith.subf %1, %3 : vector<2x128xf32>
    %13 = math.absf %12 : vector<2x128xf32>
    %cst = arith.constant 0.000000e+00 : f32
    %14 = vector.broadcast %cst : f32 to vector<2x128xf32>
    %15 = arith.subf %14, %13 : vector<2x128xf32>
    %16 = math.exp %15 : vector<2x128xf32>
    %17 = math.log1p %16 : vector<2x128xf32>
    %cst_10 = arith.constant 0.000000e+00 : f32
    %18 = vector.broadcast %cst_10 : f32 to vector<2x128xf32>
    %19 = arith.maximumf %12, %18 : vector<2x128xf32>
    %20 = arith.addf %19, %17 : vector<2x128xf32>
    %cst_11 = arith.constant 0.000000e+00 : f32
    %21 = vector.broadcast %cst_11 : f32 to vector<2x128xf32>
    %22 = arith.subf %21, %12 : vector<2x128xf32>
    %cst_12 = arith.constant 0.000000e+00 : f32
    %23 = vector.broadcast %cst_12 : f32 to vector<2x128xf32>
    %24 = arith.maximumf %22, %23 : vector<2x128xf32>
    %25 = arith.addf %24, %17 : vector<2x128xf32>
    %c1_i32 = arith.constant 1 : i32
    %26 = vector.broadcast %c1_i32 : i32 to vector<2x128xi32>
    %27 = arith.cmpi eq, %5, %26 : vector<2x128xi32>
    %28 = arith.andi %27, %11 : vector<2x128xi1>
    %c0_i32 = arith.constant 0 : i32
    %29 = vector.broadcast %c0_i32 : i32 to vector<2x128xi32>
    %30 = arith.cmpi eq, %5, %29 : vector<2x128xi32>
    %31 = arith.andi %30, %11 : vector<2x128xi1>
    %cst_13 = arith.constant 0.000000e+00 : f32
    %32 = vector.broadcast %cst_13 : f32 to vector<2x128xf32>
    %33 = arith.subf %32, %25 : vector<2x128xf32>
    %cst_14 = arith.constant 0x7F800000 : f32
    %34 = vector.broadcast %cst_14 : f32 to vector<2x128xf32>
    %35 = arith.select %31, %33, %34 : vector<2x128xi1>, vector<2x128xf32>
    %c0_15 = arith.constant 0 : index
    %c0_16 = arith.constant 0 : index
    %c0_17 = arith.constant 0 : index
    %36 = vector.load %arg4[%c0_15, %c0_16, %c0_17] : memref<1x2x128xf32, #tpu.memory_space<vmem>>, vector<1x2x128xf32>
    %37 = vector.shape_cast %36 : vector<1x2x128xf32> to vector<2x128xf32>
    %38 = vector.shape_cast %35 : vector<2x128xf32> to vector<1x2x128xf32>
    tpu.vector_store %arg4[%c0_15, %c0_16, %c0_17], %38 {strides = array<i32>} : memref<1x2x128xf32, #tpu.memory_space<vmem>>, vector<1x2x128xf32>,
    %cst_18 = arith.constant 0.000000e+00 : f32
    %39 = vector.broadcast %cst_18 : f32 to vector<8x128xf32>
    %c0_19 = arith.constant 0 : index
    %c0_20 = arith.constant 0 : index
    %c0_21 = arith.constant 0 : index
    %c0_22 = arith.constant 0 : index
    %40 = vector.load %arg5[%c0_19, %c0_20, %c0_21, %c0_22] : memref<1x1x8x128xf32, #tpu.memory_space<vmem>>, vector<1x1x8x128xf32>
    %41 = vector.shape_cast %40 : vector<1x1x8x128xf32> to vector<8x128xf32>
    %42 = vector.shape_cast %39 : vector<8x128xf32> to vector<1x1x8x128xf32>
    tpu.vector_store %arg5[%c0_19, %c0_20, %c0_21, %c0_22], %42 {strides = array<i32>} : memref<1x1x8x128xf32, #tpu.memory_space<vmem>>, vector<1x1x8x128xf32>,
    %cst_23 = arith.constant 0.000000e+00 : f32
    %43 = vector.broadcast %cst_23 : f32 to vector<2x128xf32>
    %44 = arith.select %28, %20, %43 : vector<2x128xi1>, vector<2x128xf32>
    %cst_24 = arith.constant dense<0.000000e+00> : vector<128xf32>
    %45 = vector.multi_reduction <add>, %44, %cst_24 [0] : vector<2x128xf32> to vector<128xf32>
    %46 = vector.shape_cast %45 : vector<128xf32> to vector<1x128xf32>
    %c0_25 = arith.constant 0 : index
    %c0_26 = arith.constant 0 : index
    %c0_27 = arith.constant 0 : index
    %c0_28 = arith.constant 0 : index
    %47 = vector.load %arg5[%c0_25, %c0_26, %c0_27, %c0_28] : memref<1x1x8x128xf32, #tpu.memory_space<vmem>>, vector<1x1x1x128xf32>
    %48 = vector.shape_cast %47 : vector<1x1x1x128xf32> to vector<1x128xf32>
    %49 = vector.shape_cast %46 : vector<1x128xf32> to vector<1x1x1x128xf32>
    tpu.vector_store %arg5[%c0_25, %c0_26, %c0_27, %c0_28], %49 {strides = array<i32>} : memref<1x1x8x128xf32, #tpu.memory_space<vmem>>, vector<1x1x1x128xf32>,
    %50 = arith.extui %28 : vector<2x128xi1> to vector<2x128xi32>
    %51 = arith.sitofp %50 : vector<2x128xi32> to vector<2x128xf32>
    %cst_29 = arith.constant dense<0.000000e+00> : vector<128xf32>
    %52 = vector.multi_reduction <add>, %51, %cst_29 [0] : vector<2x128xf32> to vector<128xf32>
    %53 = vector.shape_cast %52 : vector<128xf32> to vector<1x128xf32>
    %c0_30 = arith.constant 0 : index
    %c0_31 = arith.constant 0 : index
    %c1_32 = arith.constant 1 : index
    %c0_33 = arith.constant 0 : index
    %54 = vector.load %arg5[%c0_30, %c0_31, %c1_32, %c0_33] : memref<1x1x8x128xf32, #tpu.memory_space<vmem>>, vector<1x1x1x128xf32>
    %55 = vector.shape_cast %54 : vector<1x1x1x128xf32> to vector<1x128xf32>
    %56 = vector.shape_cast %53 : vector<1x128xf32> to vector<1x1x1x128xf32>
    tpu.vector_store %arg5[%c0_30, %c0_31, %c1_32, %c0_33], %56 {strides = array<i32>} : memref<1x1x8x128xf32, #tpu.memory_space<vmem>>, vector<1x1x1x128xf32>,
    %57 = arith.extui %31 : vector<2x128xi1> to vector<2x128xi32>
    %58 = arith.sitofp %57 : vector<2x128xi32> to vector<2x128xf32>
    %cst_34 = arith.constant dense<0.000000e+00> : vector<128xf32>
    %59 = vector.multi_reduction <add>, %58, %cst_34 [0] : vector<2x128xf32> to vector<128xf32>
    %60 = vector.shape_cast %59 : vector<128xf32> to vector<1x128xf32>
    %c0_35 = arith.constant 0 : index
    %c0_36 = arith.constant 0 : index
    %c2 = arith.constant 2 : index
    %c0_37 = arith.constant 0 : index
    %61 = vector.load %arg5[%c0_35, %c0_36, %c2, %c0_37] : memref<1x1x8x128xf32, #tpu.memory_space<vmem>>, vector<1x1x1x128xf32>
    %62 = vector.shape_cast %61 : vector<1x1x1x128xf32> to vector<1x128xf32>
    %63 = vector.shape_cast %60 : vector<1x128xf32> to vector<1x1x1x128xf32>
    tpu.vector_store %arg5[%c0_35, %c0_36, %c2, %c0_37], %63 {strides = array<i32>} : memref<1x1x8x128xf32, #tpu.memory_space<vmem>>, vector<1x1x1x128xf32>,
    return
  }
  func.func @transform_0(%arg0: i32, %arg1: i32) -> (i32, i32, i32, i32) {
    %c0_i32 = arith.constant 0 : i32
    %c0_i32_0 = arith.constant 0 : i32
    %c0_i32_1 = arith.constant 0 : i32
    return %arg0, %c0_i32, %arg1, %c0_i32_0 : i32, i32, i32, i32
  }
  func.func @transform_1(%arg0: i32, %arg1: i32) -> (i32, i32, i32) {
    %c0_i32 = arith.constant 0 : i32
    %c0_i32_0 = arith.constant 0 : i32
    return %arg0, %arg1, %c0_i32 : i32, i32, i32
  }
  func.func @transform_2(%arg0: i32, %arg1: i32) -> (i32, i32, i32) {
    %c0_i32 = arith.constant 0 : i32
    %c0_i32_0 = arith.constant 0 : i32
    return %arg0, %arg1, %c0_i32 : i32, i32, i32
  }
  func.func @transform_3(%arg0: i32, %arg1: i32) -> (i32, i32, i32, i32) {
    %c0_i32 = arith.constant 0 : i32
    %c0_i32_0 = arith.constant 0 : i32
    %c0_i32_1 = arith.constant 0 : i32
    return %arg0, %arg1, %c0_i32, %c0_i32_0 : i32, i32, i32, i32
  }
}

</mosaic_0001>

<llo_original>
// kernel: ce_ohem_loss.1
$region0: #{ce_ohem_loss.1}
  #allocation0 [shape = 'u32[]', space=smem, size = 0x4, offset = 0x4, fixed_abs, tag = 'smem constant byte address 0x4 - core index']
  #allocation1 [shape = 'u32[144,128]{1,0:T(1,128)}', space=vmem, size = 0x12000, scoped, tag = 'internal scratch']
  %s0 = inlined_call_operand.vmem [shape: f32[2,2,2,128], index: 0, kind: input, shape index: {}]
  %s1 = inlined_call_operand.vmem [shape: s32[2,2,128], index: 1, kind: input, shape index: {}]
  %s2 = inlined_call_operand.vmem [shape: f32[2,2,128], index: 2, kind: output, shape index: {0}]
  %s3 = inlined_call_operand.vmem [shape: f32[2,1,8,128], index: 3, kind: output, shape index: {1}]
  %4 = xla_tuple %s2, %s3
  %s5 = sld [smem:[#allocation0]]
  $region49: #{ce_ohem_loss.1} parent=0
    _
  %s7 = ssub.s32 1, %s5
  %s8 = scalar_select 0, %s7, %s5
  loop: start=0, step=1, limit=4
  $region2: #{ce_ohem_loss.1} parent=0 // loop_pre_header
    _
  $region3: #{ce_ohem_loss.1} parent=0 // loop_header
    %s10 = sphi 0, %s14
    %p11 = scmp.ge.s32.totalorder %s10, 4
    %s17 = sphi 0, %s29
    %s18 = sphi 0, %s25
    %s19 = sphi 0, %s17
    %s20 = sphi 0, %s18
    %s21 = sphi 0, %s19
    %s22 = sphi 0, %s20
    %s34 = sphi 0, %s36
    %s37 = sphi 0, %s34
    %s38 = sphi 0, %s37
    %s54 = sphi 0, %s38
    %s62 = sphi 0, %s64
    %s65 = sphi 0, %s62
    %s66 = sphi 0, %s65
    %s82 = sphi 0, %s66
    %s90 = sphi 0, %s92
    %s93 = sphi 0, %s90
    %s94 = sphi 0, %s93
    %s110 = sphi 0, %s94
    %s118 = sphi 0, %s120
    %s121 = sphi 0, %s118
    %s122 = sphi 0, %s121
    %s138 = sphi 0, %s122
  $region4: #{ce_ohem_loss.1} parent=0 // loop_header_branch
    %13 = sbr.rel (%p11) target = $region8
  $region5: #{ce_ohem_loss.1} parent=0 // loop_body
    %s15 = ssub.s32 %s10, 1
    %s16 = ssub.s32 %s10, 2
    %s23 = sadd.s32 1, %s18
    %p24 = scmp.ge.s32.totalorder %s23, 1
    %s25 = scalar_select %p24, 0, %s23
    %s26 = sadd.s32 1, %s17
    %s27 = scalar_select %p24, %s26, %s17
    %p28 = scmp.ge.s32.totalorder %s27, 2
    %s29 = scalar_select %p28, 0, %s27
    %s30 = ssub.s32 %s17, %s29
    %s31 = ssub.s32 %s18, %s25
    %s32 = sor.u32 %s30, %s31
    %p33 = scmp.eq.s32.totalorder %s32, 0
    %s35 = sadd.s32 %s34, 1
    %s36 = scalar_select %p33, %s34, %s35
    %p39 = pneg %p33
    %p40 = scmp.eq.s32.totalorder %s10, 1
    %p41 = por %p39, %p40
    %p42 = scmp.ne.s32.totalorder %s34, %s37
    %p43 = scmp.eq.s32.totalorder %s10, 0
    %p44 = por %p42, %p43
    %p45 = scmp.ne.s32.totalorder %s34, %s37
    %p46 = scmp.eq.s32.totalorder %s15, 1
    %p47 = por %p45, %p46
    %p48 = scmp.ne.s32.totalorder %s37, %s38
    %p49 = scmp.eq.s32.totalorder %s15, 0
    %p50 = por %p48, %p49
    %p51 = scmp.ne.s32.totalorder %s37, %s38
    %p52 = scmp.eq.s32.totalorder %s16, 1
    %p53 = por %p51, %p52
    %p55 = scmp.ne.s32.totalorder %s38, %s54
    %p56 = scmp.eq.s32.totalorder %s16, 0
    %p57 = por %p55, %p56
    %s58 = ssub.s32 %s17, %s29
    %s59 = ssub.s32 %s18, %s25
    %s60 = sor.u32 %s58, %s59
    %p61 = scmp.eq.s32.totalorder %s60, 0
    %s63 = sadd.s32 %s62, 1
    %s64 = scalar_select %p61, %s62, %s63
    %p67 = pneg %p61
    %p68 = scmp.eq.s32.totalorder %s10, 1
    %p69 = por %p67, %p68
    %p70 = scmp.ne.s32.totalorder %s62, %s65
    %p71 = scmp.eq.s32.totalorder %s10, 0
    %p72 = por %p70, %p71
    %p73 = scmp.ne.s32.totalorder %s62, %s65
    %p74 = scmp.eq.s32.totalorder %s15, 1
    %p75 = por %p73, %p74
    %p76 = scmp.ne.s32.totalorder %s65, %s66
    %p77 = scmp.eq.s32.totalorder %s15, 0
    %p78 = por %p76, %p77
    %p79 = scmp.ne.s32.totalorder %s65, %s66
    %p80 = scmp.eq.s32.totalorder %s16, 1
    %p81 = por %p79, %p80
    %p83 = scmp.ne.s32.totalorder %s66, %s82
    %p84 = scmp.eq.s32.totalorder %s16, 0
    %p85 = por %p83, %p84
    %s86 = ssub.s32 %s17, %s29
    %s87 = ssub.s32 %s18, %s25
    %s88 = sor.u32 %s86, %s87
    %p89 = scmp.eq.s32.totalorder %s88, 0
    %s91 = sadd.s32 %s90, 1
    %s92 = scalar_select %p89, %s90, %s91
    %p95 = pneg %p89
    %p96 = scmp.eq.s32.totalorder %s10, 1
    %p97 = por %p95, %p96
    %p98 = scmp.ne.s32.totalorder %s90, %s93
    %p99 = scmp.eq.s32.totalorder %s10, 0
    %p100 = por %p98, %p99
    %p101 = scmp.ne.s32.totalorder %s90, %s93
    %p102 = scmp.eq.s32.totalorder %s15, 1
    %p103 = por %p101, %p102
    %p104 = scmp.ne.s32.totalorder %s93, %s94
    %p105 = scmp.eq.s32.totalorder %s15, 0
    %p106 = por %p104, %p105
    %p107 = scmp.ne.s32.totalorder %s93, %s94
    %p108 = scmp.eq.s32.totalorder %s16, 1
    %p109 = por %p107, %p108
    %p111 = scmp.ne.s32.totalorder %s94, %s110
    %p112 = scmp.eq.s32.totalorder %s16, 0
    %p113 = por %p111, %p112
    %s114 = ssub.s32 %s17, %s29
    %s115 = ssub.s32 %s18, %s25
    %s116 = sor.u32 %s114, %s115
    %p117 = scmp.eq.s32.totalorder %s116, 0
    %s119 = sadd.s32 %s118, 1
    %s120 = scalar_select %p117, %s118, %s119
    %p123 = pneg %p117
    %p124 = scmp.eq.s32.totalorder %s10, 1
    %p125 = por %p123, %p124
    %p126 = scmp.ne.s32.totalorder %s118, %s121
    %p127 = scmp.eq.s32.totalorder %s10, 0
    %p128 = por %p126, %p127
    %p129 = scmp.ne.s32.totalorder %s118, %s121
    %p130 = scmp.eq.s32.totalorder %s15, 1
    %p131 = por %p129, %p130
    %p132 = scmp.ne.s32.totalorder %s121, %s122
    %p133 = scmp.eq.s32.totalorder %s15, 0
    %p134 = por %p132, %p133
    %p135 = scmp.ne.s32.totalorder %s121, %s122
    %p136 = scmp.eq.s32.totalorder %s16, 1
    %p137 = por %p135, %p136
    %p139 = scmp.ne.s32.totalorder %s122, %s138
    %p140 = scmp.eq.s32.totalorder %s16, 0
    %p141 = por %p139, %p140
    %p142 = scmp.le.s32.totalorder 1, %s10
    %p143 = scmp.lt.s32.totalorder %s10, 3
    %p144 = pnand %p142, %p143
    %p145 = pneg %p144
    // Predicated region
    $region9: #{ce_ohem_loss.1} parent=5 // pred_check
      _
    $region10: #{ce_ohem_loss.1} parent=5 // pred_check_branch
      %147 = sbr.rel (%p144) target = $region12
    $region11: #{ce_ohem_loss.1} parent=5 // pred_region
      %s148 = ssub.s32 %s10, 1
    $region12: #{ce_ohem_loss.1} parent=5 // pred_fallthru
      _
    %p149 = scmp.lt.s32.totalorder %s10, 2
    // Predicated region
    $region13: #{ce_ohem_loss.1} parent=5 // pred_check
      %p150 = pneg %p149
    $region14: #{ce_ohem_loss.1} parent=5 // pred_check_branch
      %152 = sbr.rel (%p150) target = $region16
    $region15: #{ce_ohem_loss.1} parent=5 // pred_region
      // Predicated region
      $region17: #{ce_ohem_loss.1} parent=15 // pred_check
        %p153 = pneg %p44
      $region18: #{ce_ohem_loss.1} parent=15 // pred_check_branch
        %155 = sbr.rel (%p153) target = $region20
      $region19: #{ce_ohem_loss.1} parent=15 // pred_region
        %p156 = scmp.lt.s32.totalorder %s17, 1
        %s157 = scalar_select %p156, %s17, 1
        %p158 = scmp.lt.s32.totalorder %s18, 0
        %s159 = scalar_select %p158, %s18, 0
        %s160 = smul.addr %s157, 2
        %s161 = sadd.s32 %s159, %s160
        %s162 = smul.addr %s161, 2
        %s163 = scalar_lea.vmem %s0, %s162
      $region20: #{ce_ohem_loss.1} parent=15 // pred_fallthru
        _
      // Predicated region
      $region21: #{ce_ohem_loss.1} parent=15 // pred_check
        %p164 = pneg %p72
      $region22: #{ce_ohem_loss.1} parent=15 // pred_check_branch
        %166 = sbr.rel (%p164) target = $region24
      $region23: #{ce_ohem_loss.1} parent=15 // pred_region
        %p167 = scmp.lt.s32.totalorder %s17, 1
        %s168 = scalar_select %p167, %s17, 1
        %p169 = scmp.lt.s32.totalorder %s18, 0
        %s170 = scalar_select %p169, %s18, 0
        %s171 = sadd.s32 %s170, %s168
        %s172 = smul.addr %s171, 2
        %s173 = scalar_lea.vmem %s1, %s172
      $region24: #{ce_ohem_loss.1} parent=15 // pred_fallthru
        _
    $region16: #{ce_ohem_loss.1} parent=5 // pred_fallthru
      _
    %p174 = scmp.le.s32.totalorder 1, %s10
    %p175 = scmp.lt.s32.totalorder %s10, 3
    %p176 = pnand %p174, %p175
    %p177 = pneg %p176
    // Predicated region
    $region25: #{ce_ohem_loss.1} parent=5 // pred_check
      _
    $region26: #{ce_ohem_loss.1} parent=5 // pred_check_branch
      %179 = sbr.rel (%p176) target = $region28
    $region27: #{ce_ohem_loss.1} parent=5 // pred_region
      %s180 = ssub.s32 %s10, 1
      %p181 = scmp.lt.s32.totalorder %s19, 1
      %s182 = scalar_select %p181, %s19, 1
      %p183 = scmp.lt.s32.totalorder %s20, 0
      %s184 = scalar_select %p183, %s20, 0
      %s185 = smul.addr %s182, 2
      %s186 = sadd.s32 %s184, %s185
      %s187 = smul.addr %s186, 2
      %s188 = scalar_lea.vmem %s0, %s187
      %p189 = pneg %p50
      %p190 = pneg %p47
      %p191 = scmp.lt.s32.totalorder %s19, 1
      %s192 = scalar_select %p191, %s19, 1
      %p193 = scmp.lt.s32.totalorder %s20, 0
      %s194 = scalar_select %p193, %s20, 0
      %s195 = sadd.s32 %s194, %s192
      %s196 = smul.addr %s195, 2
      %s197 = scalar_lea.vmem %s1, %s196
      %p198 = pneg %p78
      %p199 = pneg %p75
      %p200 = pneg %p106
      %p201 = pneg %p103
      %p202 = scmp.lt.s32.totalorder %s19, 1
      %s203 = scalar_select %p202, %s19, 1
      %p204 = scmp.lt.s32.totalorder %s20, 0
      %s205 = scalar_select %p204, %s20, 0
      %s206 = sadd.s32 %s205, %s203
      %s207 = smul.addr %s206, 2
      %s208 = scalar_lea.vmem %s2, %s207
      %p209 = pneg %p134
      %p210 = pneg %p131
      %p211 = scmp.lt.s32.totalorder %s19, 1
      %s212 = scalar_select %p211, %s19, 1
      %p213 = scmp.lt.s32.totalorder %s20, 0
      %s214 = scalar_select %p213, %s20, 0
      %s215 = sadd.s32 %s214, %s212
      %s216 = smul.addr %s215, 8
      %s217 = scalar_lea.vmem %s3, %s216
      %p218 = scmp.lt.s32.totalorder %s19, 1
      %s219 = scalar_select %p218, %s19, 1
      %p220 = scmp.lt.s32.totalorder %s20, 0
      %s221 = scalar_select %p220, %s20, 0
      %s222 = smul.addr %s219, 2
      %s223 = sadd.s32 %s221, %s222
      %s224 = smul.addr %s223, 2
      %s225 = scalar_lea.vmem %s0, %s224
      %p226 = scmp.lt.s32.totalorder %s19, 1
      %s227 = scalar_select %p226, %s19, 1
      %p228 = scmp.lt.s32.totalorder %s20, 0
      %s229 = scalar_select %p228, %s20, 0
      %s230 = sadd.s32 %s229, %s227
      %s231 = smul.addr %s230, 2
      %s232 = scalar_lea.vmem %s1, %s231
      %p233 = scmp.lt.s32.totalorder %s19, 1
      %s234 = scalar_select %p233, %s19, 1
      %p235 = scmp.lt.s32.totalorder %s20, 0
      %s236 = scalar_select %p235, %s20, 0
      %s237 = sadd.s32 %s236, %s234
      %s238 = smul.addr %s237, 2
      %s239 = scalar_lea.vmem %s2, %s238
      %p240 = scmp.lt.s32.totalorder %s19, 1
      %s241 = scalar_select %p240, %s19, 1
      %p242 = scmp.lt.s32.totalorder %s20, 0
      %s243 = scalar_select %p242, %s20, 0
      %s244 = sadd.s32 %s243, %s241
      %s245 = smul.addr %s244, 8
      %s246 = scalar_lea.vmem %s3, %s245
      %v247 = vld [vmem:[%s225] sm:$0x3]
      %s248 = scalar_lea.vmem %s225, 2
      %v249 = vld [vmem:[%s248] sm:$0x3]
      %v250 = vld [vmem:[%s232] sm:$0x3]
      %v251 = vlaneseq
      %v252 = vshrl.u32 %v251, 7
      %s253 = smul.u32 %s20, 2
      %v254 = vstv %s253
      %v255 = vadd.s32 %v254, %v252
      %vm256 = vcmp.lt.s32.totalorder %v255, 2
      %v257 = vsub.f32 %v247, %v249
      %v258 = vand.u32 2147483647, %v257
      %v259 = vsub.f32 0.0, %v258
      %v260 = vmul.f32 %v259, 1.442695
      %v261 = vpow.pop %v260
      %v262 = vadd.f32 %v261, 1.0
      %v263 = vlog2.pop %v262
      %v264 = vmul.f32 %v263, 0.6931472
      %v265 = vmul.f32 -0.5, %v261
      %v266 = vadd.f32 %v265, 1.0
      %v267 = vmul.f32 %v266, %v261
      %v268 = vand.u32 2147483647, %v261
      %vm269 = vcmp.lt.f32.partialorder %v268, 0.0004427343
      %v270 = vsel %vm269, %v267, %v264
      %v271 = vmax.f32 %v257, 0.0
      %v272 = vadd.f32 %v271, %v270
      %v273 = vsub.f32 0.0, %v257
      %v274 = vmax.f32 %v273, 0.0
      %v275 = vadd.f32 %v274, %v270
      %vm276 = vcmp.eq.s32.totalorder %v250, 1
      %vm277 = vmand %vm276, %vm256
      %vm278 = vcmp.eq.s32.totalorder %v250, 0
      %vm279 = vmand %vm278, %vm256
      %v280 = vsub.f32 0.0, %v275
      %v281 = vsel %vm279, %v280, inf
      %282 = vst [vmem:[%s239] sm:$0x3] %v281
      %283 = vst [vmem:[%s246] sm:$0xff] 0.0
      %v284 = vsel %vm277, %v272, 0.0
      %vm285 = vcmask 1041408
      %v286 = vsel %vm285, %v284, 0.0
      %v287 = vrot.slane %v286, 4
      %v288 = vadd.f32 %v286, %v287
      %v289 = vrot.slane %v288, 2
      %v290 = vadd.f32 %v288, %v289
      %v291 = vrot.slane %v290, 1
      %v292 = vadd.f32 %v290, %v291
      %293 = vst [vmem:[%s246] sm:$0x1] %v292
      %v294 = vsel %vm277, 1, 0
      %v295 = vcvt.s32.f32 %v294
      %v296 = vsel %vm285, %v295, 0.0
      %v297 = vrot.slane %v296, 4
      %v298 = vadd.f32 %v296, %v297
      %v299 = vrot.slane %v298, 2
      %v300 = vadd.f32 %v298, %v299
      %v301 = vrot.slane %v300, 1
      %v302 = vadd.f32 %v300, %v301
      %303 = vst [vmem:[%s246 + $0x1] sm:$0x1] %v302
      %v304 = vsel %vm279, 1, 0
      %v305 = vcvt.s32.f32 %v304
      %v306 = vsel %vm285, %v305, 0.0
      %v307 = vrot.slane %v306, 4
      %v308 = vadd.f32 %v306, %v307
      %v309 = vrot.slane %v308, 2
      %v310 = vadd.f32 %v308, %v309
      %v311 = vrot.slane %v310, 1
      %v312 = vadd.f32 %v310, %v311
      %313 = vst [vmem:[%s246 + $0x2] sm:$0x1] %v312
      %p314 = scmp.lt.s32.totalorder %s19, 1
      %s315 = scalar_select %p314, %s19, 1
      %p316 = scmp.lt.s32.totalorder %s20, 0
      %s317 = scalar_select %p316, %s20, 0
      %s318 = sadd.s32 %s317, %s315
      %s319 = smul.addr %s318, 2
      %s320 = scalar_lea.vmem %s2, %s319
      %p321 = scmp.lt.s32.totalorder %s19, 1
      %s322 = scalar_select %p321, %s19, 1
      %p323 = scmp.lt.s32.totalorder %s20, 0
      %s324 = scalar_select %p323, %s20, 0
      %s325 = sadd.s32 %s324, %s322
      %s326 = smul.addr %s325, 8
      %s327 = scalar_lea.vmem %s3, %s326
      // Predicated region
      $region29: #{ce_ohem_loss.1} parent=27 // pred_check
        %p328 = pneg %p103
      $region30: #{ce_ohem_loss.1} parent=27 // pred_check_branch
        %330 = sbr.rel (%p328) target = $region32
      $region31: #{ce_ohem_loss.1} parent=27 // pred_region
        _
      $region32: #{ce_ohem_loss.1} parent=27 // pred_fallthru
        _
      // Predicated region
      $region33: #{ce_ohem_loss.1} parent=27 // pred_check
        %p331 = pneg %p131
      $region34: #{ce_ohem_loss.1} parent=27 // pred_check_branch
        %333 = sbr.rel (%p331) target = $region36
      $region35: #{ce_ohem_loss.1} parent=27 // pred_region
        _
      $region36: #{ce_ohem_loss.1} parent=27 // pred_fallthru
        _
    $region28: #{ce_ohem_loss.1} parent=5 // pred_fallthru
      _
    %p334 = scmp.le.s32.totalorder 2, %s10
    // Predicated region
    $region37: #{ce_ohem_loss.1} parent=5 // pred_check
      %p335 = pneg %p334
    $region38: #{ce_ohem_loss.1} parent=5 // pred_check_branch
      %337 = sbr.rel (%p335) target = $region40
    $region39: #{ce_ohem_loss.1} parent=5 // pred_region
      %s338 = ssub.s32 %s10, 2
      // Predicated region
      $region41: #{ce_ohem_loss.1} parent=39 // pred_check
        %p339 = pneg %p109
      $region42: #{ce_ohem_loss.1} parent=39 // pred_check_branch
        %341 = sbr.rel (%p339) target = $region44
      $region43: #{ce_ohem_loss.1} parent=39 // pred_region
        %p342 = scmp.lt.s32.totalorder %s21, 1
        %s343 = scalar_select %p342, %s21, 1
        %p344 = scmp.lt.s32.totalorder %s22, 0
        %s345 = scalar_select %p344, %s22, 0
        %s346 = sadd.s32 %s345, %s343
        %s347 = smul.addr %s346, 2
        %s348 = scalar_lea.vmem %s2, %s347
      $region44: #{ce_ohem_loss.1} parent=39 // pred_fallthru
        _
      // Predicated region
      $region45: #{ce_ohem_loss.1} parent=39 // pred_check
        %p349 = pneg %p137
      $region46: #{ce_ohem_loss.1} parent=39 // pred_check_branch
        %351 = sbr.rel (%p349) target = $region48
      $region47: #{ce_ohem_loss.1} parent=39 // pred_region
        %p352 = scmp.lt.s32.totalorder %s21, 1
        %s353 = scalar_select %p352, %s21, 1
        %p354 = scmp.lt.s32.totalorder %s22, 0
        %s355 = scalar_select %p354, %s22, 0
        %s356 = sadd.s32 %s355, %s353
        %s357 = smul.addr %s356, 8
        %s358 = scalar_lea.vmem %s3, %s357
      $region48: #{ce_ohem_loss.1} parent=39 // pred_fallthru
        _
    $region40: #{ce_ohem_loss.1} parent=5 // pred_fallthru
      _
  $region6: #{ce_ohem_loss.1} parent=0 // loop_footer
    %s14 = sadd.s32 1, %s10
  $region7: #{ce_ohem_loss.1} parent=0 // loop_footer_branch
    %9 = sbr.rel target = $region3
  $region8: #{ce_ohem_loss.1} parent=0 // loop_exit
    _

</llo_original>
